<compile_context>
chip_gen: v7x
topology: tpu7x:2x2x1
jax: 0.10.0
libtpu: 0.0.40
codegen_flags: <defaults>
</compile_context>

<pallas_src>
import functools

import jax
import jax.numpy as jnp
from jax.experimental import pallas as pl
from jax.experimental.pallas import tpu as pltpu


def _round_up(x, m):
    return ((x + m - 1) // m) * m


def decoder_mlp_kernel(z_ref, h_ref, w1z_ref, w1h_ref, b1_ref, w2_ref, b2_ref,
                       o_ref):
    # Linear 1 (fused concat: x@W1 == z@W1_z + h@W1_h), f32 accumulate on MXU.
    acc = jnp.dot(z_ref[...], w1z_ref[...], preferred_element_type=jnp.float32)
    acc = acc + jnp.dot(h_ref[...], w1h_ref[...],
                        preferred_element_type=jnp.float32)
    acc = acc + b1_ref[...].astype(jnp.float32)
    hid = jnp.maximum(acc, 0.0)

    # Linear 2. Feed the MXU in the weight dtype (no-op cast when f32).
    y = jnp.dot(hid.astype(w2_ref.dtype), w2_ref[...],
                preferred_element_type=jnp.float32)
    y = y + b2_ref[...].astype(jnp.float32)

    o_ref[...] = y.astype(o_ref.dtype)


@functools.partial(jax.jit, static_argnames=("block_b",))
def decoder_forward(z, h, params, *, block_b=256):
    """z: (B, latent_dim), h: (B, hidden_dim) -> (B, out_dim)."""
    w1, b1, w2, b2 = params["w1"], params["b1"], params["w2"], params["b2"]
    B, latent_dim = z.shape
    _, hidden_dim = h.shape
    d_hid = w1.shape[1]
    d_out = w2.shape[1]

    # Lane-dense padding of the feature dims (zeros -> math unchanged).
    d_hid_p = _round_up(d_hid, 128)
    d_out_p = _round_up(d_out, 128)

    # Split W1 along its input axis (fused concat) and zero-pad columns/rows.
    w1_z = jnp.pad(w1[:latent_dim, :], ((0, 0), (0, d_hid_p - d_hid)))
    w1_h = jnp.pad(w1[latent_dim:, :], ((0, 0), (0, d_hid_p - d_hid)))
    b1_p = jnp.pad(b1, ((0, 0), (0, d_hid_p - d_hid)))
    w2_p = jnp.pad(w2, ((0, d_hid_p - d_hid), (0, d_out_p - d_out)))
    b2_p = jnp.pad(b2, ((0, 0), (0, d_out_p - d_out)))

    # Batch tiling: weights stay VMEM-resident; activations stream per tile.
    tb = min(block_b, _round_up(B, 8))
    b_p = _round_up(B, tb)
    if b_p != B:
        z = jnp.pad(z, ((0, b_p - B), (0, 0)))
        h = jnp.pad(h, ((0, b_p - B), (0, 0)))
    grid = (b_p // tb,)

    out_padded = pl.pallas_call(
        decoder_mlp_kernel,
        out_shape=jax.ShapeDtypeStruct((b_p, d_out_p), z.dtype),
        grid_spec=pltpu.PrefetchScalarGridSpec(
            num_scalar_prefetch=0,
            grid=grid,
            in_specs=[
                pl.BlockSpec((tb, latent_dim), lambda i: (i, 0)),       # z
                pl.BlockSpec((tb, hidden_dim), lambda i: (i, 0)),       # h
                pl.BlockSpec((latent_dim, d_hid_p), lambda i: (0, 0)),  # W1_z
                pl.BlockSpec((hidden_dim, d_hid_p), lambda i: (0, 0)),  # W1_h
                pl.BlockSpec((1, d_hid_p), lambda i: (0, 0)),           # b1
                pl.BlockSpec((d_hid_p, d_out_p), lambda i: (0, 0)),     # W2
                pl.BlockSpec((1, d_out_p), lambda i: (0, 0)),           # b2
            ],
            out_specs=pl.BlockSpec((tb, d_out_p), lambda i: (i, 0)),
        ),
        compiler_params=pltpu.CompilerParams(
            dimension_semantics=("parallel",)),
    )(z, h, w1_z, w1_h, b1_p, b2_p and b1_p * 0 + b1_p if False else b1_p,  # noqa: E501  (kept simple below)
      ) if False else pl.pallas_call(
        decoder_mlp_kernel,
        out_shape=jax.ShapeDtypeStruct((b_p, d_out_p), z.dtype),
        grid_spec=pltpu.PrefetchScalarGridSpec(
            num_scalar_prefetch=0,
            grid=grid,
            in_specs=[
                pl.BlockSpec((tb, latent_dim), lambda i: (i, 0)),       # z
                pl.BlockSpec((tb, hidden_dim), lambda i: (i, 0)),       # h
                pl.BlockSpec((latent_dim, d_hid_p), lambda i: (0, 0)),  # W1_z
                pl.BlockSpec((hidden_dim, d_hid_p), lambda i: (0, 0)),  # W1_h
                pl.BlockSpec((1, d_hid_p), lambda i: (0, 0)),           # b1
                pl.BlockSpec((d_hid_p, d_out_p), lambda i: (0, 0)),     # W2
                pl.BlockSpec((1, d_out_p), lambda i: (0, 0)),           # b2
            ],
            out_specs=pl.BlockSpec((tb, d_out_p), lambda i: (i, 0)),
        ),
        compiler_params=pltpu.CompilerParams(
            dimension_semantics=("parallel",)),
    )(z, h, w1_z, w1_h, b1_p, w2_p, b2_p)

    # Strip batch / lane padding back to the module's true output shape.
    return out_padded[:B, :d_out]


def init_decoder_params(key, latent_dim, hidden_dim, out_dim, dtype=jnp.float32):
    """Deterministic init matching the PyTorch module's shapes:
       Linear(input_dim, 2*input_dim) -> ReLU -> Linear(2*input_dim, out_dim)."""
    input_dim = latent_dim + hidden_dim
    k1, k2, k3, k4 = jax.random.split(key, 4)
    lim1 = 1.0 / jnp.sqrt(input_dim)
    lim2 = 1.0 / jnp.sqrt(2 * input_dim)
    # stored as [in, out] (transpose of torch's [out, in]); semantics identical.
    w1 = jax.random.uniform(k1, (input_dim, 2 * input_dim), dtype, -lim1, lim1)
    b1 = jax.random.uniform(k2, (1, 2 * input_dim), dtype, -lim1, lim1)
    w2 = jax.random.uniform(k3, (2 * input_dim, out_dim), dtype, -lim2, lim2)
    b2 = jax.random.uniform(k4, (1, out_dim), dtype, -lim2, lim2)
    return {"w1": w1, "b1": b1, "w2": w2, "b2": b2}


def decoder_forward_ref(z, h, params):
    x = jnp.concatenate([z, h], axis=-1)
    hid = jnp.maximum(x @ params["w1"] + params["b1"], 0.0)
    return hid @ params["w2"] + params["b2"]


if __name__ == "__main__":
    # Small config consistent with the module:
    #   latent_dim=16, hidden_dim=16 -> MLP input_dim=32, hidden layer 64
    #   config.input_dim (reconstruction target dim) = 32
    latent_dim, hidden_dim, out_dim = 16, 16, 32
    batch = 8

    key = jax.random.PRNGKey(0)
    kp, kz, kh = jax.random.split(key, 3)
    params = init_decoder_params(kp, latent_dim, hidden_dim, out_dim)

    z = jax.random.normal(kz, (batch, latent_dim), jnp.float32)
    h = jax.random.normal(kh, (batch, hidden_dim), jnp.float32)

    out = decoder_forward(z, h, params)
    jax.block_until_ready(out)

    ref = decoder_forward_ref(z, h, params)
    assert out.shape == (batch, out_dim)
    assert jnp.allclose(out, ref, atol=1e-5, rtol=1e-5), "mismatch vs reference"

    print("KERNEL_OK")
</pallas_src>

<mosaic_0001>
module attributes {stable_mosaic.version = 11 : i64} {
  func.func @decoder_mlp_kernel(%arg0: i32, %arg1: memref<8x16xf32, #tpu.memory_space<vmem>>, %arg2: memref<8x16xf32, #tpu.memory_space<vmem>>, %arg3: memref<16x128xf32, #tpu.memory_space<vmem>>, %arg4: memref<16x128xf32, #tpu.memory_space<vmem>>, %arg5: memref<1x128xf32, #tpu.memory_space<vmem>>, %arg6: memref<128x128xf32, #tpu.memory_space<vmem>>, %arg7: memref<1x128xf32, #tpu.memory_space<vmem>>, %arg8: memref<8x128xf32, #tpu.memory_space<vmem>>) attributes {dimension_semantics = [#tpu.dimension_semantics<parallel>], iteration_bounds = array<i64: 1>, scalar_prefetch = 0 : i64, scratch_operands = 0 : i64, tpu.core_type = #tpu.core_type<tc>, window_params = [{transform_indices = @transform_0, window_bounds = array<i64: 8, 16>}, {transform_indices = @transform_1, window_bounds = array<i64: 8, 16>}, {pipeline_mode = #tpu.pipeline_mode<synchronous>, transform_indices = @transform_2, window_bounds = array<i64: 16, 128>}, {pipeline_mode = #tpu.pipeline_mode<synchronous>, transform_indices = @transform_3, window_bounds = array<i64: 16, 128>}, {pipeline_mode = #tpu.pipeline_mode<synchronous>, transform_indices = @transform_4, window_bounds = array<i64: 1, 128>}, {pipeline_mode = #tpu.pipeline_mode<synchronous>, transform_indices = @transform_5, window_bounds = array<i64: 128, 128>}, {pipeline_mode = #tpu.pipeline_mode<synchronous>, transform_indices = @transform_6, window_bounds = array<i64: 1, 128>}, {transform_indices = @transform_7, window_bounds = array<i64: 8, 128>}]} {
    %c0 = arith.constant 0 : index
    %c0_0 = arith.constant 0 : index
    %0 = vector.load %arg1[%c0, %c0_0] : memref<8x16xf32, #tpu.memory_space<vmem>>, vector<8x16xf32>
    %c0_1 = arith.constant 0 : index
    %c0_2 = arith.constant 0 : index
    %1 = vector.load %arg3[%c0_1, %c0_2] : memref<16x128xf32, #tpu.memory_space<vmem>>, vector<16x128xf32>
    %cst = arith.constant dense<0.000000e+00> : vector<8x128xf32>
    %2 = tpu.matmul %0, %1, %cst {dimension_numbers = #tpu.dot_dimension_numbers<[1], [0], [0], [1], [0, 0, 1, 1], [], []>} : vector<8x16xf32>, vector<16x128xf32>, vector<8x128xf32> -> vector<8x128xf32>
    %c0_3 = arith.constant 0 : index
    %c0_4 = arith.constant 0 : index
    %3 = vector.load %arg2[%c0_3, %c0_4] : memref<8x16xf32, #tpu.memory_space<vmem>>, vector<8x16xf32>
    %c0_5 = arith.constant 0 : index
    %c0_6 = arith.constant 0 : index
    %4 = vector.load %arg4[%c0_5, %c0_6] : memref<16x128xf32, #tpu.memory_space<vmem>>, vector<16x128xf32>
    %cst_7 = arith.constant dense<0.000000e+00> : vector<8x128xf32>
    %5 = tpu.matmul %3, %4, %cst_7 {dimension_numbers = #tpu.dot_dimension_numbers<[1], [0], [0], [1], [0, 0, 1, 1], [], []>} : vector<8x16xf32>, vector<16x128xf32>, vector<8x128xf32> -> vector<8x128xf32>
    %6 = arith.addf %2, %5 : vector<8x128xf32>
    %c0_8 = arith.constant 0 : index
    %c0_9 = arith.constant 0 : index
    %7 = vector.load %arg5[%c0_8, %c0_9] : memref<1x128xf32, #tpu.memory_space<vmem>>, vector<1x128xf32>
    %8 = vector.broadcast %7 : vector<1x128xf32> to vector<8x128xf32>
    %9 = arith.addf %6, %8 : vector<8x128xf32>
    %cst_10 = arith.constant 0.000000e+00 : f32
    %10 = vector.broadcast %cst_10 : f32 to vector<8x128xf32>
    %11 = arith.maximumf %9, %10 : vector<8x128xf32>
    %c0_11 = arith.constant 0 : index
    %c0_12 = arith.constant 0 : index
    %12 = vector.load %arg6[%c0_11, %c0_12] : memref<128x128xf32, #tpu.memory_space<vmem>>, vector<128x128xf32>
    %cst_13 = arith.constant dense<0.000000e+00> : vector<8x128xf32>
    %13 = tpu.matmul %11, %12, %cst_13 {dimension_numbers = #tpu.dot_dimension_numbers<[1], [0], [0], [1], [0, 0, 1, 1], [], []>} : vector<8x128xf32>, vector<128x128xf32>, vector<8x128xf32> -> vector<8x128xf32>
    %c0_14 = arith.constant 0 : index
    %c0_15 = arith.constant 0 : index
    %14 = vector.load %arg7[%c0_14, %c0_15] : memref<1x128xf32, #tpu.memory_space<vmem>>, vector<1x128xf32>
    %15 = vector.broadcast %14 : vector<1x128xf32> to vector<8x128xf32>
    %16 = arith.addf %13, %15 : vector<8x128xf32>
    %c0_16 = arith.constant 0 : index
    %c0_17 = arith.constant 0 : index
    %17 = vector.load %arg8[%c0_16, %c0_17] : memref<8x128xf32, #tpu.memory_space<vmem>>, vector<8x128xf32>
    tpu.vector_store %arg8[%c0_16, %c0_17], %16 {strides = array<i32>} : memref<8x128xf32, #tpu.memory_space<vmem>>, vector<8x128xf32>,
    return
  }
  func.func @transform_0(%arg0: i32) -> (i32, i32) {
    %c0_i32 = arith.constant 0 : i32
    %c0_i32_0 = arith.constant 0 : i32
    return %arg0, %c0_i32 : i32, i32
  }
  func.func @transform_1(%arg0: i32) -> (i32, i32) {
    %c0_i32 = arith.constant 0 : i32
    %c0_i32_0 = arith.constant 0 : i32
    return %arg0, %c0_i32 : i32, i32
  }
  func.func @transform_2(%arg0: i32) -> (i32, i32) {
    %c0_i32 = arith.constant 0 : i32
    %c0_i32_0 = arith.constant 0 : i32
    %c0_i32_1 = arith.constant 0 : i32
    return %c0_i32, %c0_i32_0 : i32, i32
  }
  func.func @transform_3(%arg0: i32) -> (i32, i32) {
    %c0_i32 = arith.constant 0 : i32
    %c0_i32_0 = arith.constant 0 : i32
    %c0_i32_1 = arith.constant 0 : i32
    return %c0_i32, %c0_i32_0 : i32, i32
  }
  func.func @transform_4(%arg0: i32) -> (i32, i32) {
    %c0_i32 = arith.constant 0 : i32
    %c0_i32_0 = arith.constant 0 : i32
    %c0_i32_1 = arith.constant 0 : i32
    return %c0_i32, %c0_i32_0 : i32, i32
  }
  func.func @transform_5(%arg0: i32) -> (i32, i32) {
    %c0_i32 = arith.constant 0 : i32
    %c0_i32_0 = arith.constant 0 : i32
    %c0_i32_1 = arith.constant 0 : i32
    return %c0_i32, %c0_i32_0 : i32, i32
  }
  func.func @transform_6(%arg0: i32) -> (i32, i32) {
    %c0_i32 = arith.constant 0 : i32
    %c0_i32_0 = arith.constant 0 : i32
    %c0_i32_1 = arith.constant 0 : i32
    return %c0_i32, %c0_i32_0 : i32, i32
  }
  func.func @transform_7(%arg0: i32) -> (i32, i32) {
    %c0_i32 = arith.constant 0 : i32
    %c0_i32_0 = arith.constant 0 : i32
    return %arg0, %c0_i32 : i32, i32
  }
}

</mosaic_0001>

<llo_original>
// kernel: decoder_forward.1
$region0: #{decoder_forward.1}
  #allocation0 [shape = 'u32[]', space=smem, size = 0x4, offset = 0x4, fixed_abs, tag = 'smem constant byte address 0x4 - core index']
  #allocation1 [shape = 'u32[144,128]{1,0:T(1,128)}', space=vmem, size = 0x12000, scoped, tag = 'internal scratch']
  %s0 = inlined_call_operand.vmem [shape: f32[8,16], index: 0, kind: input, shape index: {}]
  %s1 = inlined_call_operand.vmem [shape: f32[8,16], index: 1, kind: input, shape index: {}]
  %s2 = inlined_call_operand.vmem [shape: f32[16,128], index: 2, kind: input, shape index: {}]
  %s3 = inlined_call_operand.vmem [shape: f32[16,128], index: 3, kind: input, shape index: {}]
  %s4 = inlined_call_operand.vmem [shape: f32[1,128], index: 4, kind: input, shape index: {}]
  %s5 = inlined_call_operand.vmem [shape: f32[128,128], index: 5, kind: input, shape index: {}]
  %s6 = inlined_call_operand.vmem [shape: f32[1,128], index: 6, kind: input, shape index: {}]
  %s7 = inlined_call_operand.hbm [shape: f32[8,128], index: 7, kind: output, shape index: {}]
  %s8 = sld [smem:[#allocation0]]
  $region38: #{decoder_forward.1} parent=0
    _
  %s10 = ssub.s32 1, %s8
  %s11 = scalar_select 0, %s10, %s8
  $region1: #{decoder_forward.1} parent=0
    #allocation2 [shape = 'u8[4096]{0}', space=vmem, size = 0x1000, scoped, tag = 'output window, operand 0, single buffered']
    #allocation3 [shape = 's32[1]{0}', space=sflag, size = 0x4, scoped, tag = 'scoped memory for decoder_forward.1']
    %12 = vsyncpa [#allocation3], 0
    // Predicated region
    $region2: #{decoder_forward.1} parent=1 // pred_check
      _
    $region3: #{decoder_forward.1} parent=1 // pred_check_branch
      %14 = sbr.rel (0) target = $region5
    $region4: #{decoder_forward.1} parent=1 // pred_region
      _
    $region5: #{decoder_forward.1} parent=1 // pred_fallthru
      _
    // Predicated region
    $region6: #{decoder_forward.1} parent=1 // pred_check
      _
    $region7: #{decoder_forward.1} parent=1 // pred_check_branch
      %16 = sbr.rel (0) target = $region9
    $region8: #{decoder_forward.1} parent=1 // pred_region
      _
    $region9: #{decoder_forward.1} parent=1 // pred_fallthru
      _
    // Predicated region
    $region10: #{decoder_forward.1} parent=1 // pred_check
      _
    $region11: #{decoder_forward.1} parent=1 // pred_check_branch
      %18 = sbr.rel (0) target = $region13
    $region12: #{decoder_forward.1} parent=1 // pred_region
      _
    $region13: #{decoder_forward.1} parent=1 // pred_fallthru
      _
    // Predicated region
    $region14: #{decoder_forward.1} parent=1 // pred_check
      _
    $region15: #{decoder_forward.1} parent=1 // pred_check_branch
      %20 = sbr.rel (0) target = $region17
    $region16: #{decoder_forward.1} parent=1 // pred_region
      _
    $region17: #{decoder_forward.1} parent=1 // pred_fallthru
      _
    // Predicated region
    $region18: #{decoder_forward.1} parent=1 // pred_check
      _
    $region19: #{decoder_forward.1} parent=1 // pred_check_branch
      %22 = sbr.rel (0) target = $region21
    $region20: #{decoder_forward.1} parent=1 // pred_region
      _
    $region21: #{decoder_forward.1} parent=1 // pred_fallthru
      _
    // Predicated region
    $region22: #{decoder_forward.1} parent=1 // pred_check
      _
    $region23: #{decoder_forward.1} parent=1 // pred_check_branch
      %24 = sbr.rel (0) target = $region25
    $region24: #{decoder_forward.1} parent=1 // pred_region
      _
    $region25: #{decoder_forward.1} parent=1 // pred_fallthru
      _
    // Predicated region
    $region26: #{decoder_forward.1} parent=1 // pred_check
      _
    $region27: #{decoder_forward.1} parent=1 // pred_check_branch
      %26 = sbr.rel (0) target = $region29
    $region28: #{decoder_forward.1} parent=1 // pred_region
      _
    $region29: #{decoder_forward.1} parent=1 // pred_fallthru
      _
    %v27 = vld [vmem:[%s0] sm:$0xff]
    %v28 = vld [vmem:[%s2] sm:$0xff]
    %v29 = vld [vmem:[%s2 + $0x8] sm:$0xff]
    %v30 = vld [vmem:[%s1] sm:$0xff]
    %v31 = vld [vmem:[%s3] sm:$0xff]
    %v32 = vld [vmem:[%s3 + $0x8] sm:$0xff]
    %vm33 = vcmask 130048
    %v35 = vsel %vm33, %v30, 0
    %37 = vmatprep.subr.mxu0 0.0
    %38 = vmatpush1.msra.mxu0 %v31
    %39 = vmatprep.subr.mxu0 0.0
    %40 = vmatpush1.msra.mxu0 %v32
    %41 = vmatprep.subr.mxu0 0.0
    %42 = vmatpush1.msra.mxu0 0.0
    %43 = vmatprep.subr.mxu0 0.0
    %44 = vmatpush1.msra.mxu0 0.0
    %45 = vmatprep.subr.mxu0 0.0
    %46 = vmatpush1.msra.mxu0 0.0
    %47 = vmatprep.subr.mxu0 0.0
    %48 = vmatpush1.msra.mxu0 0.0
    %49 = vmatprep.subr.mxu0 0.0
    %50 = vmatpush1.msra.mxu0 0.0
    %51 = vmatprep.subr.mxu0 0.0
    %52 = vmatpush1.msra.mxu0 0.0
    %53 = vmatprep.subr.mxu0 0.0
    %54 = vmatpush1.msra.mxu0 0.0
    %55 = vmatprep.subr.mxu0 0.0
    %56 = vmatpush1.msra.mxu0 0.0
    %57 = vmatprep.subr.mxu0 0.0
    %58 = vmatpush1.msra.mxu0 0.0
    %59 = vmatprep.subr.mxu0 0.0
    %60 = vmatpush1.msra.mxu0 0.0
    %61 = vmatprep.subr.mxu0 0.0
    %62 = vmatpush1.msra.mxu0 0.0
    %63 = vmatprep.subr.mxu0 0.0
    %64 = vmatpush1.msra.mxu0 0.0
    %65 = vmatprep.subr.mxu0 0.0
    %66 = vmatpush1.msra.mxu0 0.0
    %67 = vmatprep.subr.mxu0 0.0
    %68 = vmatpush1.msra.mxu0 0.0
    %69 = vmatprep.subr.mxu0 0.0
    %70 = vmatpush1.msra.mxu0 0.0
    %71 = vmatprep.subr.mxu0 0.0
    %72 = vmatpush1.msra.mxu0 0.0
    %73 = vmatprep.subr.mxu0 0.0
    %74 = vmatpush1.msra.mxu0 0.0
    %75 = vmatprep.subr.mxu0 0.0
    %76 = vmatpush1.msra.mxu0 0.0
    %77 = vmatprep.subr.mxu0 0.0
    %78 = vmatpush1.msra.mxu0 0.0
    %79 = vmatprep.subr.mxu0 0.0
    %80 = vmatpush1.msra.mxu0 0.0
    %81 = vmatprep.subr.mxu0 0.0
    %82 = vmatpush1.msra.mxu0 0.0
    %83 = vmatprep.subr.mxu0 0.0
    %84 = vmatpush1.msra.mxu0 0.0
    %85 = vmatprep.subr.mxu0 0.0
    %86 = vmatpush1.msra.mxu0 0.0
    %87 = vmatprep.subr.mxu0 0.0
    %88 = vmatpush1.msra.mxu0 0.0
    %89 = vmatprep.subr.mxu0 0.0
    %90 = vmatpush1.msra.mxu0 0.0
    %91 = vmatprep.subr.mxu0 0.0
    %92 = vmatpush1.msra.mxu0 0.0
    %93 = vmatprep.subr.mxu0 0.0
    %94 = vmatpush1.msra.mxu0 0.0
    %95 = vmatprep.subr.mxu0 0.0
    %96 = vmatpush1.msra.mxu0 0.0
    %97 = vmatprep.subr.mxu0 0.0
    %98 = vmatpush1.msra.mxu0 0.0
    %99 = vmatprep.subr.mxu0 0.0
    %100 = vmatpush1.msra.mxu0 0.0
    %101 = vmatprep.mubr.f32.mxu0 0.0
    %102 = vmatmul.mubr.f32.gmra.mrb[0].mxu0 %v35
    %v103 = vpop.f32.mrb[0].mxu0
    %v104 = vadd.f32 0.0, %v103
    %v105 = vpop.f32.mrb[0].mxu0
    %106 = vdwg.mxu0
    %v108 = vsel %vm33, %v27, 0
    %110 = vmatprep.subr.mxu0 0.0
    %111 = vmatpush1.msra.mxu0 %v28
    %112 = vmatprep.subr.mxu0 0.0
    %113 = vmatpush1.msra.mxu0 %v29
    %114 = vmatprep.subr.mxu0 0.0
    %115 = vmatpush1.msra.mxu0 0.0
    %116 = vmatprep.subr.mxu0 0.0
    %117 = vmatpush1.msra.mxu0 0.0
    %118 = vmatprep.subr.mxu0 0.0
    %119 = vmatpush1.msra.mxu0 0.0
    %120 = vmatprep.subr.mxu0 0.0
    %121 = vmatpush1.msra.mxu0 0.0
    %122 = vmatprep.subr.mxu0 0.0
    %123 = vmatpush1.msra.mxu0 0.0
    %124 = vmatprep.subr.mxu0 0.0
    %125 = vmatpush1.msra.mxu0 0.0
    %126 = vmatprep.subr.mxu0 0.0
    %127 = vmatpush1.msra.mxu0 0.0
    %128 = vmatprep.subr.mxu0 0.0
    %129 = vmatpush1.msra.mxu0 0.0
    %130 = vmatprep.subr.mxu0 0.0
    %131 = vmatpush1.msra.mxu0 0.0
    %132 = vmatprep.subr.mxu0 0.0
    %133 = vmatpush1.msra.mxu0 0.0
    %134 = vmatprep.subr.mxu0 0.0
    %135 = vmatpush1.msra.mxu0 0.0
    %136 = vmatprep.subr.mxu0 0.0
    %137 = vmatpush1.msra.mxu0 0.0
    %138 = vmatprep.subr.mxu0 0.0
    %139 = vmatpush1.msra.mxu0 0.0
    %140 = vmatprep.subr.mxu0 0.0
    %141 = vmatpush1.msra.mxu0 0.0
    %142 = vmatprep.subr.mxu0 0.0
    %143 = vmatpush1.msra.mxu0 0.0
    %144 = vmatprep.subr.mxu0 0.0
    %145 = vmatpush1.msra.mxu0 0.0
    %146 = vmatprep.subr.mxu0 0.0
    %147 = vmatpush1.msra.mxu0 0.0
    %148 = vmatprep.subr.mxu0 0.0
    %149 = vmatpush1.msra.mxu0 0.0
    %150 = vmatprep.subr.mxu0 0.0
    %151 = vmatpush1.msra.mxu0 0.0
    %152 = vmatprep.subr.mxu0 0.0
    %153 = vmatpush1.msra.mxu0 0.0
    %154 = vmatprep.subr.mxu0 0.0
    %155 = vmatpush1.msra.mxu0 0.0
    %156 = vmatprep.subr.mxu0 0.0
    %157 = vmatpush1.msra.mxu0 0.0
    %158 = vmatprep.subr.mxu0 0.0
    %159 = vmatpush1.msra.mxu0 0.0
    %160 = vmatprep.subr.mxu0 0.0
    %161 = vmatpush1.msra.mxu0 0.0
    %162 = vmatprep.subr.mxu0 0.0
    %163 = vmatpush1.msra.mxu0 0.0
    %164 = vmatprep.subr.mxu0 0.0
    %165 = vmatpush1.msra.mxu0 0.0
    %166 = vmatprep.subr.mxu0 0.0
    %167 = vmatpush1.msra.mxu0 0.0
    %168 = vmatprep.subr.mxu0 0.0
    %169 = vmatpush1.msra.mxu0 0.0
    %170 = vmatprep.subr.mxu0 0.0
    %171 = vmatpush1.msra.mxu0 0.0
    %172 = vmatprep.subr.mxu0 0.0
    %173 = vmatpush1.msra.mxu0 0.0
    %174 = vmatprep.mubr.f32.mxu0 0.0
    %175 = vmatmul.mubr.f32.gmra.mrb[0].mxu0 %v108
    %v176 = vpop.f32.mrb[0].mxu0
    %v177 = vadd.f32 %v104, %v176
    %v178 = vpop.f32.mrb[0].mxu0
    %179 = vdwg.mxu0
    %v180 = vld [vmem:[%s4] sm:$0x1]
    %v182 = vlaneseq
    %v183 = vshrl.u32 %v182, 7
    %v184 = vsub.s32 0, %v183
    %v185 = vrot.slane %v180, %v184
    %v187 = vadd.f32 %v177, %v185
    %v188 = vmax.f32 %v187, 0.0
    %v189 = vld [vmem:[%s5] sm:$0xff]
    %v190 = vld [vmem:[%s5 + $0x8] sm:$0xff]
    %v191 = vld [vmem:[%s5 + $0x10] sm:$0xff]
    %v192 = vld [vmem:[%s5 + $0x18] sm:$0xff]
    %v193 = vld [vmem:[%s5 + $0x20] sm:$0xff]
    %v194 = vld [vmem:[%s5 + $0x28] sm:$0xff]
    %v195 = vld [vmem:[%s5 + $0x30] sm:$0xff]
    %v196 = vld [vmem:[%s5 + $0x38] sm:$0xff]
    %v197 = vld [vmem:[%s5 + $0x40] sm:$0xff]
    %v198 = vld [vmem:[%s5 + $0x48] sm:$0xff]
    %v199 = vld [vmem:[%s5 + $0x50] sm:$0xff]
    %v200 = vld [vmem:[%s5 + $0x58] sm:$0xff]
    %v201 = vld [vmem:[%s5 + $0x60] sm:$0xff]
    %v202 = vld [vmem:[%s5 + $0x68] sm:$0xff]
    %v203 = vld [vmem:[%s5 + $0x70] sm:$0xff]
    %v204 = vld [vmem:[%s5 + $0x78] sm:$0xff]
    %v205 = vld [vmem:[%s6] sm:$0x1]
    %v207 = vlaneseq
    %v208 = vshrl.u32 %v207, 7
    %v209 = vsub.s32 0, %v208
    %v210 = vrot.slane %v205, %v209
    %212 = vmatprep.subr.mxu0 0.0
    %213 = vmatpush1.msra.mxu0 %v189
    %214 = vmatprep.subr.mxu0 0.0
    %215 = vmatpush1.msra.mxu0 %v190
    %216 = vmatprep.subr.mxu0 0.0
    %217 = vmatpush1.msra.mxu0 %v191
    %218 = vmatprep.subr.mxu0 0.0
    %219 = vmatpush1.msra.mxu0 %v192
    %220 = vmatprep.subr.mxu0 0.0
    %221 = vmatpush1.msra.mxu0 %v193
    %222 = vmatprep.subr.mxu0 0.0
    %223 = vmatpush1.msra.mxu0 %v194
    %224 = vmatprep.subr.mxu0 0.0
    %225 = vmatpush1.msra.mxu0 %v195
    %226 = vmatprep.subr.mxu0 0.0
    %227 = vmatpush1.msra.mxu0 %v196
    %228 = vmatprep.subr.mxu0 0.0
    %229 = vmatpush1.msra.mxu0 %v197
    %230 = vmatprep.subr.mxu0 0.0
    %231 = vmatpush1.msra.mxu0 %v198
    %232 = vmatprep.subr.mxu0 0.0
    %233 = vmatpush1.msra.mxu0 %v199
    %234 = vmatprep.subr.mxu0 0.0
    %235 = vmatpush1.msra.mxu0 %v200
    %236 = vmatprep.subr.mxu0 0.0
    %237 = vmatpush1.msra.mxu0 %v201
    %238 = vmatprep.subr.mxu0 0.0
    %239 = vmatpush1.msra.mxu0 %v202
    %240 = vmatprep.subr.mxu0 0.0
    %241 = vmatpush1.msra.mxu0 %v203
    %242 = vmatprep.subr.mxu0 0.0
    %243 = vmatpush1.msra.mxu0 %v204
    %244 = vmatprep.subr.mxu0 0.0
    %245 = vmatpush1.msra.mxu0 0.0
    %246 = vmatprep.subr.mxu0 0.0
    %247 = vmatpush1.msra.mxu0 0.0
    %248 = vmatprep.subr.mxu0 0.0
    %249 = vmatpush1.msra.mxu0 0.0
    %250 = vmatprep.subr.mxu0 0.0
    %251 = vmatpush1.msra.mxu0 0.0
    %252 = vmatprep.subr.mxu0 0.0
    %253 = vmatpush1.msra.mxu0 0.0
    %254 = vmatprep.subr.mxu0 0.0
    %255 = vmatpush1.msra.mxu0 0.0
    %256 = vmatprep.subr.mxu0 0.0
    %257 = vmatpush1.msra.mxu0 0.0
    %258 = vmatprep.subr.mxu0 0.0
    %259 = vmatpush1.msra.mxu0 0.0
    %260 = vmatprep.subr.mxu0 0.0
    %261 = vmatpush1.msra.mxu0 0.0
    %262 = vmatprep.subr.mxu0 0.0
    %263 = vmatpush1.msra.mxu0 0.0
    %264 = vmatprep.subr.mxu0 0.0
    %265 = vmatpush1.msra.mxu0 0.0
    %266 = vmatprep.subr.mxu0 0.0
    %267 = vmatpush1.msra.mxu0 0.0
    %268 = vmatprep.subr.mxu0 0.0
    %269 = vmatpush1.msra.mxu0 0.0
    %270 = vmatprep.subr.mxu0 0.0
    %271 = vmatpush1.msra.mxu0 0.0
    %272 = vmatprep.subr.mxu0 0.0
    %273 = vmatpush1.msra.mxu0 0.0
    %274 = vmatprep.subr.mxu0 0.0
    %275 = vmatpush1.msra.mxu0 0.0
    %276 = vmatprep.mubr.f32.mxu0 0.0
    %277 = vmatmul.mubr.f32.gmra.mrb[0].mxu0 %v188
    %v278 = vpop.f32.mrb[0].mxu0
    %v279 = vadd.f32 %v210, %v278
    %v280 = vpop.f32.mrb[0].mxu0
    %281 = vdwg.mxu0
    %282 = vst [vmem:[#allocation2] sm:$0xff] %v279
    // Predicated region
    $region30: #{decoder_forward.1} parent=1 // pred_check
      _
    $region31: #{decoder_forward.1} parent=1 // pred_check_branch
      %284 = sbr.rel (0) target = $region33
    $region32: #{decoder_forward.1} parent=1 // pred_region
      %s286 = ssub.s32 128, 128
      %287 = vsyncadd [#allocation3], %s286
      %s289 = sshll.u32 [#allocation2], 4
      %s290 = int_to_ptr.vmem [resolvable:$true] %s289
      %292 = dma.vmem_to_hbm [thread:$0]  %s290, 128, %s7, [#allocation3]
    $region33: #{decoder_forward.1} parent=1 // pred_fallthru
      _
    // Predicated region
    $region34: #{decoder_forward.1} parent=1 // pred_check
      _
    $region35: #{decoder_forward.1} parent=1 // pred_check_branch
      %294 = sbr.rel (0) target = $region37
    $region36: #{decoder_forward.1} parent=1 // pred_region
      %295 = dma.done [#allocation3], 128
    $region37: #{decoder_forward.1} parent=1 // pred_fallthru
      _
    %296 = vsyncpa [#allocation3], 1

</llo_original>
